<compile_context>
chip_gen: v7x
topology: tpu7x:2x2x1
jax: 0.10.0
libtpu: 0.0.40
codegen_flags: <defaults>
</compile_context>

<pallas_src>
import math

import jax
import jax.numpy as jnp
from jax.experimental import pallas as pl
from jax.experimental.pallas import tpu as pltpu

EPS = 1e-5


def player_stats_kernel(x_ref, w1_ref, w2_ref, wfc_ref, pv_ref, o_ref):
    x = x_ref[...]                                   # (B, L, Cin) f32, channels-last
    B = x.shape[0]

    pv = pv_ref[...]                                 # (8, 128) packed per-channel params
    g1, bt1 = pv[0, :32], pv[1, :32]
    g2, bt2 = pv[2, :64], pv[3, :64]
    bfc = pv[4, :16]

    def conv3(t, w):
        # im2col: 3 shifted views concatenated along the lane (channel) axis, then a
        # single MXU matmul against the pre-transposed (3*Cin, Cout) weight.
        Lo = t.shape[1] - 2
        cols = jnp.concatenate(
            [t[:, 0:Lo, :], t[:, 1:1 + Lo, :], t[:, 2:2 + Lo, :]], axis=-1)
        return jnp.einsum('blk,ko->blo', cols, w,
                          preferred_element_type=jnp.float32)

    def bn_relu(t, g, bt):
        # fused train-mode BN: one reduction pass (sum, sum-sq) -> biased variance,
        # then one FMA pass: y = t * scale + shift, followed by ReLU.
        n = t.shape[0] * t.shape[1]
        s1 = jnp.sum(t, axis=(0, 1))                  # (C,)
        s2 = jnp.sum(t * t, axis=(0, 1))              # (C,)
        mu = s1 * (1.0 / n)
        var = s2 * (1.0 / n) - mu * mu
        scale = g * jax.lax.rsqrt(var + EPS)
        shift = bt - mu * scale
        return jnp.maximum(t * scale[None, None, :] + shift[None, None, :], 0.0)

    def pool2(t):
        # MaxPool1d(2) along L (sublane-split reshape + max; shapes are tiny).
        Bp, Lp, Cp = t.shape
        return jnp.max(t.reshape(Bp, Lp // 2, 2, Cp), axis=2)

    # conv1 (bias cancelled by BN) -> bn1 -> relu -> pool1
    y = pool2(bn_relu(conv3(x, w1_ref[...]), g1, bt1))        # (B, P1, 32)
    # conv2 (bias cancelled by BN) -> bn2 -> relu -> pool2
    z = pool2(bn_relu(conv3(y, w2_ref[...]), g2, bt2))        # (B, P2, 64)

    # flatten (position-major, channel-minor; wfc was pre-permuted to match PyTorch's
    # channel-major Flatten) -> fc -> relu
    flat = z.reshape(B, z.shape[1] * z.shape[2])
    out = jnp.dot(flat, wfc_ref[...], preferred_element_type=jnp.float32)
    o_ref[...] = jnp.maximum(out + bfc[None, :], 0.0)


def prepare_params(params, input_size, seq_len):
    """One-time repack of PyTorch-layout params into kernel-ready layout.

    Called once at setup; the per-forward path does no reshapes/transposes.
    """
    L1 = seq_len - 2
    P1 = L1 // 2
    L2 = P1 - 2
    P2 = L2 // 2
    fc_in = params['wfc'].shape[1]
    assert fc_in == 64 * P2, (
        "fc weight size 64*((input_size-4)//4) only matches when seq_len == input_size")

    # conv weights: torch (Cout, Cin, 3) -> im2col layout (3*Cin, Cout), tap-major rows.
    w1c = jnp.transpose(params['w1'], (2, 1, 0)).reshape(3 * input_size, 32)
    w2c = jnp.transpose(params['w2'], (2, 1, 0)).reshape(3 * 32, 64)

    # fc weight: torch channel-major flatten index (c*P2 + p) -> kernel position-major
    # index (p*64 + c), then transpose to (fc_in, 16).
    wfc_t = (params['wfc'].reshape(16, 64, P2)
             .transpose(2, 1, 0)
             .reshape(P2 * 64, 16))

    # Pack the per-channel vectors into a single lane-padded (8, 128) buffer.
    pvec = jnp.zeros((8, 128), jnp.float32)
    pvec = pvec.at[0, :32].set(params['g1'])
    pvec = pvec.at[1, :32].set(params['bt1'])
    pvec = pvec.at[2, :64].set(params['g2'])
    pvec = pvec.at[3, :64].set(params['bt2'])
    pvec = pvec.at[4, :16].set(params['bfc'])

    # NOTE: conv biases b1/b2 are intentionally NOT passed to the kernel — training-mode
    # BN's mean subtraction cancels them exactly.
    return dict(w1c=w1c, w2c=w2c, wfc_t=wfc_t, pvec=pvec)


def player_stats_forward(x_blc, prepped):
    """x_blc: (B, L, input_size) float32 — same tensor the PyTorch module receives."""
    B = x_blc.shape[0]
    args = (x_blc, prepped['w1c'], prepped['w2c'], prepped['wfc_t'], prepped['pvec'])
    return pl.pallas_call(
        player_stats_kernel,
        out_shape=jax.ShapeDtypeStruct((B, 16), jnp.float32),
        in_specs=[pl.BlockSpec(memory_space=pltpu.MemorySpace.VMEM)] * len(args),
        out_specs=pl.BlockSpec(memory_space=pltpu.MemorySpace.VMEM),
    )(*args)


def torch_style_reference(x_blc, p):
    """Pure-JAX mirror of the PyTorch forward (NCL layout, WITH conv biases)."""
    x = jnp.transpose(x_blc, (0, 2, 1))                    # x.permute(0, 2, 1) -> (B, C, L)

    def conv1d(x, w, b):
        y = jax.lax.conv_general_dilated(
            x, w, window_strides=(1,), padding='VALID',
            dimension_numbers=('NCH', 'OIH', 'NCH'))
        return y + b[None, :, None]

    def bn_train(x, g, bt):
        mu = jnp.mean(x, axis=(0, 2), keepdims=True)
        var = jnp.mean((x - mu) ** 2, axis=(0, 2), keepdims=True)
        return (x - mu) * jax.lax.rsqrt(var + EPS) * g[None, :, None] + bt[None, :, None]

    def maxpool2(x):
        B, C, L = x.shape
        return jnp.max(x[:, :, :(L // 2) * 2].reshape(B, C, L // 2, 2), axis=-1)

    y = jnp.maximum(bn_train(conv1d(x, p['w1'], p['b1']), p['g1'], p['bt1']), 0.0)
    y = maxpool2(y)
    y = jnp.maximum(bn_train(conv1d(y, p['w2'], p['b2']), p['g2'], p['bt2']), 0.0)
    y = maxpool2(y)
    flat = y.reshape(y.shape[0], -1)                       # channel-major flatten
    return jnp.maximum(flat @ p['wfc'].T + p['bfc'][None, :], 0.0)


def make_params(key, input_size):
    ks = jax.random.split(key, 11)

    def uni(k, shape, fan_in):
        a = 1.0 / math.sqrt(fan_in)
        return jax.random.uniform(k, shape, jnp.float32, -a, a)

    fc_in = 64 * ((input_size - 4) // 4)
    return dict(
        w1=uni(ks[0], (32, input_size, 3), input_size * 3),
        b1=uni(ks[1], (32,), input_size * 3),
        g1=1.0 + 0.1 * jax.random.normal(ks[2], (32,), jnp.float32),
        bt1=0.1 * jax.random.normal(ks[3], (32,), jnp.float32),
        w2=uni(ks[4], (64, 32, 3), 32 * 3),
        b2=uni(ks[5], (64,), 32 * 3),
        g2=1.0 + 0.1 * jax.random.normal(ks[6], (64,), jnp.float32),
        bt2=0.1 * jax.random.normal(ks[7], (64,), jnp.float32),
        wfc=uni(ks[8], (16, fc_in), fc_in),
        bfc=uni(ks[9], (16,), fc_in),
    )


if __name__ == "__main__":
    # input_size = 18 (also used as sequence length, so the fc formula
    # 64*((input_size-4)//4) matches the actual flattened size: 64*3 = 192).
    INPUT_SIZE = 18
    SEQ_LEN = 18
    BATCH = 2

    key = jax.random.PRNGKey(0)
    pkey, xkey = jax.random.split(key)
    params = make_params(pkey, INPUT_SIZE)
    x = jax.random.normal(xkey, (BATCH, SEQ_LEN, INPUT_SIZE), jnp.float32)

    # One-time parameter repack (per review: no per-call weight transposes).
    prepped = jax.tree_util.tree_map(jax.block_until_ready, prepare_params(params, INPUT_SIZE, SEQ_LEN))

    out = player_stats_forward(x, prepped)
    out = jax.block_until_ready(out)

    ref = torch_style_reference(x, params)
    assert out.shape == (BATCH, 16), out.shape
    assert jnp.allclose(out, ref, atol=1e-4, rtol=1e-4), float(jnp.max(jnp.abs(out - ref)))

    print("KERNEL_OK")
</pallas_src>

<mosaic_0001>
module attributes {stable_mosaic.version = 11 : i64} {
  func.func @player_stats_kernel(%arg0: memref<2x18x18xf32, #tpu.memory_space<vmem>>, %arg1: memref<54x32xf32, #tpu.memory_space<vmem>>, %arg2: memref<96x64xf32, #tpu.memory_space<vmem>>, %arg3: memref<192x16xf32, #tpu.memory_space<vmem>>, %arg4: memref<8x128xf32, #tpu.memory_space<vmem>>, %arg5: memref<2x16xf32, #tpu.memory_space<vmem>>) attributes {dimension_semantics = [], scalar_prefetch = 0 : i64, scratch_operands = 0 : i64, tpu.core_type = #tpu.core_type<tc>} {
    %c0 = arith.constant 0 : index
    %c0_0 = arith.constant 0 : index
    %c0_1 = arith.constant 0 : index
    %0 = vector.load %arg0[%c0, %c0_0, %c0_1] : memref<2x18x18xf32, #tpu.memory_space<vmem>>, vector<2x18x18xf32>
    %c0_2 = arith.constant 0 : index
    %c0_3 = arith.constant 0 : index
    %1 = vector.load %arg4[%c0_2, %c0_3] : memref<8x128xf32, #tpu.memory_space<vmem>>, vector<8x128xf32>
    %2 = vector.extract_strided_slice %1 {offsets = [0, 0], sizes = [1, 32], strides = [1, 1]} : vector<8x128xf32> to vector<1x32xf32>
    %3 = vector.shape_cast %2 : vector<1x32xf32> to vector<32xf32>
    %4 = vector.extract_strided_slice %1 {offsets = [1, 0], sizes = [1, 32], strides = [1, 1]} : vector<8x128xf32> to vector<1x32xf32>
    %5 = vector.shape_cast %4 : vector<1x32xf32> to vector<32xf32>
    %6 = vector.extract_strided_slice %1 {offsets = [2, 0], sizes = [1, 64], strides = [1, 1]} : vector<8x128xf32> to vector<1x64xf32>
    %7 = vector.shape_cast %6 : vector<1x64xf32> to vector<64xf32>
    %8 = vector.extract_strided_slice %1 {offsets = [3, 0], sizes = [1, 64], strides = [1, 1]} : vector<8x128xf32> to vector<1x64xf32>
    %9 = vector.shape_cast %8 : vector<1x64xf32> to vector<64xf32>
    %10 = vector.extract_strided_slice %1 {offsets = [4, 0], sizes = [1, 16], strides = [1, 1]} : vector<8x128xf32> to vector<1x16xf32>
    %11 = vector.shape_cast %10 : vector<1x16xf32> to vector<16xf32>
    %c0_4 = arith.constant 0 : index
    %c0_5 = arith.constant 0 : index
    %12 = vector.load %arg1[%c0_4, %c0_5] : memref<54x32xf32, #tpu.memory_space<vmem>>, vector<54x32xf32>
    %13 = vector.extract_strided_slice %0 {offsets = [0, 0, 0], sizes = [2, 16, 18], strides = [1, 1, 1]} : vector<2x18x18xf32> to vector<2x16x18xf32>
    %14 = vector.extract_strided_slice %0 {offsets = [0, 1, 0], sizes = [2, 16, 18], strides = [1, 1, 1]} : vector<2x18x18xf32> to vector<2x16x18xf32>
    %15 = vector.extract_strided_slice %0 {offsets = [0, 2, 0], sizes = [2, 16, 18], strides = [1, 1, 1]} : vector<2x18x18xf32> to vector<2x16x18xf32>
    %16 = tpu.concatenate %13, %14, %15 in 2 : vector<2x16x18xf32>, vector<2x16x18xf32>, vector<2x16x18xf32> -> vector<2x16x54xf32>
    "tpu.trace_start"() <{level = 10 : i32, message = "blk,ko->blo"}> : () -> ()
    %cst = arith.constant dense<0.000000e+00> : vector<2x16x32xf32>
    %17 = tpu.matmul %16, %12, %cst {dimension_numbers = #tpu.dot_dimension_numbers<[2], [0], [0, 1], [1], [0, 0, 0, 1, 1, 1], [], []>} : vector<2x16x54xf32>, vector<54x32xf32>, vector<2x16x32xf32> -> vector<2x16x32xf32>
    "tpu.trace_stop"() : () -> ()
    %cst_6 = arith.constant dense<0.000000e+00> : vector<32xf32>
    %18 = vector.multi_reduction <add>, %17, %cst_6 [0, 1] : vector<2x16x32xf32> to vector<32xf32>
    %19 = arith.mulf %17, %17 : vector<2x16x32xf32>
    %cst_7 = arith.constant dense<0.000000e+00> : vector<32xf32>
    %20 = vector.multi_reduction <add>, %19, %cst_7 [0, 1] : vector<2x16x32xf32> to vector<32xf32>
    %cst_8 = arith.constant 3.125000e-02 : f32
    %21 = vector.broadcast %cst_8 : f32 to vector<32xf32>
    %22 = arith.mulf %18, %21 : vector<32xf32>
    %cst_9 = arith.constant 3.125000e-02 : f32
    %23 = vector.broadcast %cst_9 : f32 to vector<32xf32>
    %24 = arith.mulf %20, %23 : vector<32xf32>
    %25 = arith.mulf %22, %22 : vector<32xf32>
    %26 = arith.subf %24, %25 : vector<32xf32>
    %cst_10 = arith.constant 9.99999974E-6 : f32
    %27 = vector.broadcast %cst_10 : f32 to vector<32xf32>
    %28 = arith.addf %26, %27 : vector<32xf32>
    %29 = math.rsqrt %28 : vector<32xf32>
    %30 = arith.mulf %3, %29 : vector<32xf32>
    %31 = arith.mulf %22, %30 : vector<32xf32>
    %32 = arith.subf %5, %31 : vector<32xf32>
    %33 = vector.shape_cast %30 : vector<32xf32> to vector<1x1x32xf32>
    %34 = vector.broadcast %33 : vector<1x1x32xf32> to vector<2x16x32xf32>
    %35 = arith.mulf %17, %34 : vector<2x16x32xf32>
    %36 = vector.shape_cast %32 : vector<32xf32> to vector<1x1x32xf32>
    %37 = vector.broadcast %36 : vector<1x1x32xf32> to vector<2x16x32xf32>
    %38 = arith.addf %35, %37 : vector<2x16x32xf32>
    %cst_11 = arith.constant 0.000000e+00 : f32
    %39 = vector.broadcast %cst_11 : f32 to vector<2x16x32xf32>
    %40 = arith.maximumf %38, %39 : vector<2x16x32xf32>
    %41 = vector.shape_cast %40 : vector<2x16x32xf32> to vector<2x8x2x32xf32>
    %cst_12 = arith.constant dense<0xFF800000> : vector<2x8x32xf32>
    %42 = vector.multi_reduction <maximumf>, %41, %cst_12 [2] : vector<2x8x2x32xf32> to vector<2x8x32xf32>
    %c0_13 = arith.constant 0 : index
    %c0_14 = arith.constant 0 : index
    %43 = vector.load %arg2[%c0_13, %c0_14] : memref<96x64xf32, #tpu.memory_space<vmem>>, vector<96x64xf32>
    %44 = vector.extract_strided_slice %42 {offsets = [0, 0, 0], sizes = [2, 6, 32], strides = [1, 1, 1]} : vector<2x8x32xf32> to vector<2x6x32xf32>
    %45 = vector.extract_strided_slice %42 {offsets = [0, 1, 0], sizes = [2, 6, 32], strides = [1, 1, 1]} : vector<2x8x32xf32> to vector<2x6x32xf32>
    %46 = vector.extract_strided_slice %42 {offsets = [0, 2, 0], sizes = [2, 6, 32], strides = [1, 1, 1]} : vector<2x8x32xf32> to vector<2x6x32xf32>
    %47 = tpu.concatenate %44, %45, %46 in 2 : vector<2x6x32xf32>, vector<2x6x32xf32>, vector<2x6x32xf32> -> vector<2x6x96xf32>
    "tpu.trace_start"() <{level = 10 : i32, message = "blk,ko->blo"}> : () -> ()
    %cst_15 = arith.constant dense<0.000000e+00> : vector<2x6x64xf32>
    %48 = tpu.matmul %47, %43, %cst_15 {dimension_numbers = #tpu.dot_dimension_numbers<[2], [0], [0, 1], [1], [0, 0, 0, 1, 1, 1], [], []>} : vector<2x6x96xf32>, vector<96x64xf32>, vector<2x6x64xf32> -> vector<2x6x64xf32>
    "tpu.trace_stop"() : () -> ()
    %cst_16 = arith.constant dense<0.000000e+00> : vector<64xf32>
    %49 = vector.multi_reduction <add>, %48, %cst_16 [0, 1] : vector<2x6x64xf32> to vector<64xf32>
    %50 = arith.mulf %48, %48 : vector<2x6x64xf32>
    %cst_17 = arith.constant dense<0.000000e+00> : vector<64xf32>
    %51 = vector.multi_reduction <add>, %50, %cst_17 [0, 1] : vector<2x6x64xf32> to vector<64xf32>
    %cst_18 = arith.constant 0.0833333358 : f32
    %52 = vector.broadcast %cst_18 : f32 to vector<64xf32>
    %53 = arith.mulf %49, %52 : vector<64xf32>
    %cst_19 = arith.constant 0.0833333358 : f32
    %54 = vector.broadcast %cst_19 : f32 to vector<64xf32>
    %55 = arith.mulf %51, %54 : vector<64xf32>
    %56 = arith.mulf %53, %53 : vector<64xf32>
    %57 = arith.subf %55, %56 : vector<64xf32>
    %cst_20 = arith.constant 9.99999974E-6 : f32
    %58 = vector.broadcast %cst_20 : f32 to vector<64xf32>
    %59 = arith.addf %57, %58 : vector<64xf32>
    %60 = math.rsqrt %59 : vector<64xf32>
    %61 = arith.mulf %7, %60 : vector<64xf32>
    %62 = arith.mulf %53, %61 : vector<64xf32>
    %63 = arith.subf %9, %62 : vector<64xf32>
    %64 = vector.shape_cast %61 : vector<64xf32> to vector<1x1x64xf32>
    %65 = vector.broadcast %64 : vector<1x1x64xf32> to vector<2x6x64xf32>
    %66 = arith.mulf %48, %65 : vector<2x6x64xf32>
    %67 = vector.shape_cast %63 : vector<64xf32> to vector<1x1x64xf32>
    %68 = vector.broadcast %67 : vector<1x1x64xf32> to vector<2x6x64xf32>
    %69 = arith.addf %66, %68 : vector<2x6x64xf32>
    %cst_21 = arith.constant 0.000000e+00 : f32
    %70 = vector.broadcast %cst_21 : f32 to vector<2x6x64xf32>
    %71 = arith.maximumf %69, %70 : vector<2x6x64xf32>
    %72 = vector.shape_cast %71 : vector<2x6x64xf32> to vector<2x3x2x64xf32>
    %cst_22 = arith.constant dense<0xFF800000> : vector<2x3x64xf32>
    %73 = vector.multi_reduction <maximumf>, %72, %cst_22 [2] : vector<2x3x2x64xf32> to vector<2x3x64xf32>
    %74 = vector.shape_cast %73 : vector<2x3x64xf32> to vector<2x192xf32>
    %c0_23 = arith.constant 0 : index
    %c0_24 = arith.constant 0 : index
    %75 = vector.load %arg3[%c0_23, %c0_24] : memref<192x16xf32, #tpu.memory_space<vmem>>, vector<192x16xf32>
    %cst_25 = arith.constant dense<0.000000e+00> : vector<2x16xf32>
    %76 = tpu.matmul %74, %75, %cst_25 {dimension_numbers = #tpu.dot_dimension_numbers<[1], [0], [0], [1], [0, 0, 1, 1], [], []>} : vector<2x192xf32>, vector<192x16xf32>, vector<2x16xf32> -> vector<2x16xf32>
    %77 = vector.shape_cast %11 : vector<16xf32> to vector<1x16xf32>
    %78 = vector.broadcast %77 : vector<1x16xf32> to vector<2x16xf32>
    %79 = arith.addf %76, %78 : vector<2x16xf32>
    %cst_26 = arith.constant 0.000000e+00 : f32
    %80 = vector.broadcast %cst_26 : f32 to vector<2x16xf32>
    %81 = arith.maximumf %79, %80 : vector<2x16xf32>
    %c0_27 = arith.constant 0 : index
    %c0_28 = arith.constant 0 : index
    %82 = vector.load %arg5[%c0_27, %c0_28] : memref<2x16xf32, #tpu.memory_space<vmem>>, vector<2x16xf32>
    tpu.vector_store %arg5[%c0_27, %c0_28], %81 {strides = array<i32>} : memref<2x16xf32, #tpu.memory_space<vmem>>, vector<2x16xf32>,
    return
  }
}

</mosaic_0001>

<llo_original>
// kernel: tpu_custom_call.1
$region0: #{tpu_custom_call.1}
  #allocation0 [shape = 'u32[]', space=smem, size = 0x4, offset = 0x4, fixed_abs, tag = 'smem constant byte address 0x4 - core index']
  #allocation1 [shape = 'u32[144,128]{1,0:T(1,128)}', space=vmem, size = 0x12000, scoped, tag = 'internal scratch']
  %s0 = inlined_call_operand.vmem [shape: f32[2,18,18], index: 0, kind: input, shape index: {}]
  %s1 = inlined_call_operand.vmem [shape: f32[54,32], index: 1, kind: input, shape index: {}]
  %s2 = inlined_call_operand.vmem [shape: f32[96,64], index: 2, kind: input, shape index: {}]
  %s3 = inlined_call_operand.vmem [shape: f32[192,16], index: 3, kind: input, shape index: {}]
  %s4 = inlined_call_operand.vmem [shape: f32[8,128], index: 4, kind: input, shape index: {}]
  %s5 = inlined_call_operand.hbm [shape: f32[2,16], index: 5, kind: output, shape index: {}]
  %s6 = sld [smem:[#allocation0]]
  $region30: #{tpu_custom_call.1} parent=0
    _
  %s8 = ssub.s32 1, %s6
  %s9 = scalar_select 0, %s8, %s6
  $region1: #{tpu_custom_call.1} parent=0
    #allocation2 [shape = 'u8[1024]{0}', space=vmem, size = 0x400, scoped, tag = 'output window, operand 0, single buffered']
    #allocation3 [shape = 's32[1]{0}', space=sflag, size = 0x4, scoped, tag = 'scoped memory for tpu_custom_call.1']
    %10 = vsyncpa [#allocation3], 0
    // Predicated region
    $region2: #{tpu_custom_call.1} parent=1 // pred_check
      _
    $region3: #{tpu_custom_call.1} parent=1 // pred_check_branch
      %12 = sbr.rel (0) target = $region5
    $region4: #{tpu_custom_call.1} parent=1 // pred_region
      _
    $region5: #{tpu_custom_call.1} parent=1 // pred_fallthru
      _
    // Predicated region
    $region6: #{tpu_custom_call.1} parent=1 // pred_check
      _
    $region7: #{tpu_custom_call.1} parent=1 // pred_check_branch
      %14 = sbr.rel (0) target = $region9
    $region8: #{tpu_custom_call.1} parent=1 // pred_region
      _
    $region9: #{tpu_custom_call.1} parent=1 // pred_fallthru
      _
    // Predicated region
    $region10: #{tpu_custom_call.1} parent=1 // pred_check
      _
    $region11: #{tpu_custom_call.1} parent=1 // pred_check_branch
      %16 = sbr.rel (0) target = $region13
    $region12: #{tpu_custom_call.1} parent=1 // pred_region
      _
    $region13: #{tpu_custom_call.1} parent=1 // pred_fallthru
      _
    // Predicated region
    $region14: #{tpu_custom_call.1} parent=1 // pred_check
      _
    $region15: #{tpu_custom_call.1} parent=1 // pred_check_branch
      %18 = sbr.rel (0) target = $region17
    $region16: #{tpu_custom_call.1} parent=1 // pred_region
      _
    $region17: #{tpu_custom_call.1} parent=1 // pred_fallthru
      _
    // Predicated region
    $region18: #{tpu_custom_call.1} parent=1 // pred_check
      _
    $region19: #{tpu_custom_call.1} parent=1 // pred_check_branch
      %20 = sbr.rel (0) target = $region21
    $region20: #{tpu_custom_call.1} parent=1 // pred_region
      _
    $region21: #{tpu_custom_call.1} parent=1 // pred_fallthru
      _
    %v21 = vld [vmem:[%s0] sm:$0xff]
    %v22 = vld [vmem:[%s0 + $0x8] sm:$0xff]
    %v23 = vld [vmem:[%s0 + $0x10] sm:$0x3]
    %v24 = vld [vmem:[%s0 + $0x18] sm:$0xff]
    %v25 = vld [vmem:[%s0 + $0x20] sm:$0xff]
    %v26 = vld [vmem:[%s0 + $0x28] sm:$0x3]
    %v27 = vld [vmem:[%s4] sm:$0xff]
    %v28 = vld [vmem:[%s1] sm:$0xff]
    %v29 = vld [vmem:[%s1 + $0x8] sm:$0xff]
    %v30 = vld [vmem:[%s1 + $0x10] sm:$0xff]
    %v31 = vld [vmem:[%s1 + $0x18] sm:$0xff]
    %v32 = vld [vmem:[%s1 + $0x20] sm:$0xff]
    %v33 = vld [vmem:[%s1 + $0x28] sm:$0xff]
    %v34 = vld [vmem:[%s1 + $0x30] sm:$0x3f]
    %vm41 = vcmask 1046528
    %v42 = vrot.slane %v21, 1
    %v43 = vrot.slane %v22, 1
    %v44 = vsel %vm41, %v42, %v43
    %v45 = vrot.slane %v23, 1
    %v46 = vsel %vm41, %v43, %v45
    %v47 = vrot.slane %v24, 1
    %v48 = vrot.slane %v25, 1
    %v49 = vsel %vm41, %v47, %v48
    %v50 = vrot.slane %v26, 1
    %v51 = vsel %vm41, %v48, %v50
    %52 = vrot.lane.b32.xlu0 %v44, 18
    %v53 = vpop.permute.xlu0 %52
    %54 = vrot.lane.b32.xlu0 %v46, 18
    %v55 = vpop.permute.xlu0 %54
    %56 = vrot.lane.b32.xlu0 %v49, 18
    %v57 = vpop.permute.xlu0 %56
    %58 = vrot.lane.b32.xlu0 %v51, 18
    %v59 = vpop.permute.xlu0 %58
    %vm64 = vcmask 1045504
    %v65 = vrot.slane %v21, 2
    %v66 = vrot.slane %v22, 2
    %v67 = vsel %vm64, %v65, %v66
    %v68 = vrot.slane %v23, 2
    %v69 = vsel %vm64, %v66, %v68
    %v70 = vrot.slane %v24, 2
    %v71 = vrot.slane %v25, 2
    %v72 = vsel %vm64, %v70, %v71
    %v73 = vrot.slane %v26, 2
    %v74 = vsel %vm64, %v71, %v73
    %75 = vrot.lane.b32.xlu0 %v67, 36
    %v76 = vpop.permute.xlu0 %75
    %77 = vrot.lane.b32.xlu0 %v69, 36
    %v78 = vpop.permute.xlu0 %77
    %79 = vrot.lane.b32.xlu0 %v72, 36
    %v80 = vpop.permute.xlu0 %79
    %81 = vrot.lane.b32.xlu0 %v74, 36
    %v82 = vpop.permute.xlu0 %81
    %vm87 = vcmask 146432
    %v88 = vsel %vm87, %v21, %v53
    %v89 = vsel %vm87, %v22, %v55
    %v90 = vsel %vm87, %v24, %v57
    %v91 = vsel %vm87, %v25, %v59
    %vm92 = vcmask 293888
    %v93 = vsel %vm92, %v88, %v76
    %v94 = vsel %vm92, %v89, %v78
    %v95 = vsel %vm92, %v90, %v80
    %v96 = vsel %vm92, %v91, %v82
    %vm97 = vcmask 441344
    %v99 = vsel %vm97, %v93, 0
    %v102 = vsel %vm97, %v94, 0
    %v105 = vsel %vm97, %v95, 0
    %v108 = vsel %vm97, %v96, 0
    %v111 = vsel %vm64, %v34, 0
    %113 = vmatprep.subr.mxu0 0.0
    %114 = vmatpush1.msra.mxu0 %v28
    %115 = vmatprep.subr.mxu0 0.0
    %116 = vmatpush1.msra.mxu0 %v29
    %117 = vmatprep.subr.mxu0 0.0
    %118 = vmatpush1.msra.mxu0 %v30
    %119 = vmatprep.subr.mxu0 0.0
    %120 = vmatpush1.msra.mxu0 %v31
    %121 = vmatprep.subr.mxu0 0.0
    %122 = vmatpush1.msra.mxu0 %v32
    %123 = vmatprep.subr.mxu0 0.0
    %124 = vmatpush1.msra.mxu0 %v33
    %125 = vmatprep.subr.mxu0 0.0
    %126 = vmatpush1.msra.mxu0 %v111
    %127 = vmatprep.subr.mxu0 0.0
    %128 = vmatpush1.msra.mxu0 0.0
    %129 = vmatprep.subr.mxu0 0.0
    %130 = vmatpush1.msra.mxu0 0.0
    %131 = vmatprep.subr.mxu0 0.0
    %132 = vmatpush1.msra.mxu0 0.0
    %133 = vmatprep.subr.mxu0 0.0
    %134 = vmatpush1.msra.mxu0 0.0
    %135 = vmatprep.subr.mxu0 0.0
    %136 = vmatpush1.msra.mxu0 0.0
    %137 = vmatprep.subr.mxu0 0.0
    %138 = vmatpush1.msra.mxu0 0.0
    %139 = vmatprep.subr.mxu0 0.0
    %140 = vmatpush1.msra.mxu0 0.0
    %141 = vmatprep.subr.mxu0 0.0
    %142 = vmatpush1.msra.mxu0 0.0
    %143 = vmatprep.subr.mxu0 0.0
    %144 = vmatpush1.msra.mxu0 0.0
    %145 = vmatprep.subr.mxu0 0.0
    %146 = vmatpush1.msra.mxu0 0.0
    %147 = vmatprep.subr.mxu0 0.0
    %148 = vmatpush1.msra.mxu0 0.0
    %149 = vmatprep.subr.mxu0 0.0
    %150 = vmatpush1.msra.mxu0 0.0
    %151 = vmatprep.subr.mxu0 0.0
    %152 = vmatpush1.msra.mxu0 0.0
    %153 = vmatprep.subr.mxu0 0.0
    %154 = vmatpush1.msra.mxu0 0.0
    %155 = vmatprep.subr.mxu0 0.0
    %156 = vmatpush1.msra.mxu0 0.0
    %157 = vmatprep.subr.mxu0 0.0
    %158 = vmatpush1.msra.mxu0 0.0
    %159 = vmatprep.subr.mxu0 0.0
    %160 = vmatpush1.msra.mxu0 0.0
    %161 = vmatprep.subr.mxu0 0.0
    %162 = vmatpush1.msra.mxu0 0.0
    %163 = vmatprep.subr.mxu0 0.0
    %164 = vmatpush1.msra.mxu0 0.0
    %165 = vmatprep.subr.mxu0 0.0
    %166 = vmatpush1.msra.mxu0 0.0
    %167 = vmatprep.subr.mxu0 0.0
    %168 = vmatpush1.msra.mxu0 0.0
    %169 = vmatprep.subr.mxu0 0.0
    %170 = vmatpush1.msra.mxu0 0.0
    %171 = vmatprep.subr.mxu0 0.0
    %172 = vmatpush1.msra.mxu0 0.0
    %173 = vmatprep.subr.mxu0 0.0
    %174 = vmatpush1.msra.mxu0 0.0
    %175 = vmatprep.subr.mxu0 0.0
    %176 = vmatpush1.msra.mxu0 0.0
    %177 = vmatprep.mubr.f32.mxu0 0.0
    %178 = vmatmul.mubr.f32.gmra.mrb[0].mxu0 %v99
    %v179 = vpop.f32.mrb[0].mxu0
    %v180 = vadd.f32 0.0, %v179
    %v181 = vpop.f32.mrb[0].mxu0
    %182 = vmatprep.mubr.f32.mxu0 0.0
    %183 = vmatmul.mubr.f32.gmra.mrb[0].mxu0 %v102
    %v184 = vpop.f32.mrb[0].mxu0
    %v185 = vadd.f32 0.0, %v184
    %v186 = vpop.f32.mrb[0].mxu0
    %187 = vmatprep.mubr.f32.mxu0 0.0
    %188 = vmatmul.mubr.f32.gmra.mrb[0].mxu0 %v105
    %v189 = vpop.f32.mrb[0].mxu0
    %v190 = vadd.f32 0.0, %v189
    %v191 = vpop.f32.mrb[0].mxu0
    %192 = vmatprep.mubr.f32.mxu0 0.0
    %193 = vmatmul.mubr.f32.gmra.mrb[0].mxu0 %v108
    %v194 = vpop.f32.mrb[0].mxu0
    %v195 = vadd.f32 0.0, %v194
    %v196 = vpop.f32.mrb[0].mxu0
    %197 = vdwg.mxu0
    %vm198 = vcmask 261120
    %v199 = vsel %vm198, %v180, 0.0
    %v200 = vsel %vm198, %v185, 0.0
    %v201 = vadd.f32 %v199, %v200
    %v202 = vsel %vm198, %v190, 0.0
    %v203 = vadd.f32 %v201, %v202
    %v204 = vsel %vm198, %v195, 0.0
    %v205 = vadd.f32 %v203, %v204
    %v206 = vrot.slane %v205, 4
    %v207 = vadd.f32 %v205, %v206
    %v208 = vrot.slane %v207, 2
    %v209 = vadd.f32 %v207, %v208
    %v210 = vrot.slane %v209, 1
    %v211 = vadd.f32 %v209, %v210
    %v212 = vmul.f32 %v180, %v180
    %v213 = vmul.f32 %v185, %v185
    %v214 = vmul.f32 %v190, %v190
    %v215 = vmul.f32 %v195, %v195
    %v216 = vsel %vm198, %v212, 0.0
    %v217 = vsel %vm198, %v213, 0.0
    %v218 = vadd.f32 %v216, %v217
    %v219 = vsel %vm198, %v214, 0.0
    %v220 = vadd.f32 %v218, %v219
    %v221 = vsel %vm198, %v215, 0.0
    %v222 = vadd.f32 %v220, %v221
    %v223 = vrot.slane %v222, 4
    %v224 = vadd.f32 %v222, %v223
    %v225 = vrot.slane %v224, 2
    %v226 = vadd.f32 %v224, %v225
    %v227 = vrot.slane %v226, 1
    %v228 = vadd.f32 %v226, %v227
    %v229 = vmul.f32 %v211, 0.03125
    %v230 = vmul.f32 %v228, 0.03125
    %v231 = vmul.f32 %v229, %v229
    %v232 = vsub.f32 %v230, %v231
    %v233 = vadd.f32 %v232, 1e-05
    %v234 = vrsqrt.pop %v233
    %v235 = vmul.f32 %v27, %v234
    %v236 = vmul.f32 %v229, %v235
    %v238 = vrot.slane %v236, 7
    %v240 = vsub.f32 %v27, %v238
    %v241 = vlaneseq
    %v242 = vshrl.u32 %v241, 7
    %v243 = vsub.s32 0, %v242
    %v244 = vrot.slane %v235, %v243
    %v245 = vmul.f32 %v180, %v244
    %v246 = vmul.f32 %v185, %v244
    %v247 = vmul.f32 %v190, %v244
    %v248 = vmul.f32 %v195, %v244
    %v249 = vlaneseq
    %v250 = vshrl.u32 %v249, 7
    %v251 = vsub.s32 1, %v250
    %v252 = vrot.slane %v240, %v251
    %v253 = vadd.f32 %v245, %v252
    %v254 = vadd.f32 %v246, %v252
    %v255 = vadd.f32 %v247, %v252
    %v256 = vadd.f32 %v248, %v252
    %v257 = vmax.f32 %v253, 0.0
    %v258 = vmax.f32 %v254, 0.0
    %v259 = vmax.f32 %v255, 0.0
    %v260 = vmax.f32 %v256, 0.0
    %v265 = vcombine.high %v257, %v257
    %v267 = vunpack.c.l.s4 1983009808
    %v268 = vunpack.c.0.s8 %v267
    %v269 = vlaneseq
    %v270 = vshrl.u32 %v269, 7
    %v271 = vsub.s32 %v268, %v270
    %v272 = vrot.slane %v257, %v271
    %v274 = vunpack.c.l.s4 1983009808
    %v275 = vunpack.c.0.s8 %v274
    %v276 = vlaneseq
    %v277 = vshrl.u32 %v276, 7
    %v278 = vsub.s32 %v275, %v277
    %v279 = vrot.slane %v265, %v278
    %v280 = vcombine.high %v272, %v272
    %v281 = vcombine.high %v279, %v279
    %v282 = vcombine.high %v258, %v258
    %v284 = vunpack.c.l.s4 1983009808
    %v285 = vunpack.c.0.s8 %v284
    %v286 = vlaneseq
    %v287 = vshrl.u32 %v286, 7
    %v288 = vsub.s32 %v285, %v287
    %v289 = vrot.slane %v258, %v288
    %v291 = vunpack.c.l.s4 1983009808
    %v292 = vunpack.c.0.s8 %v291
    %v293 = vlaneseq
    %v294 = vshrl.u32 %v293, 7
    %v295 = vsub.s32 %v292, %v294
    %v296 = vrot.slane %v282, %v295
    %v297 = vcombine.high %v289, %v289
    %v298 = vcombine.high %v296, %v296
    %v299 = vcombine.high %v259, %v259
    %v301 = vunpack.c.l.s4 1983009808
    %v302 = vunpack.c.0.s8 %v301
    %v303 = vlaneseq
    %v304 = vshrl.u32 %v303, 7
    %v305 = vsub.s32 %v302, %v304
    %v306 = vrot.slane %v259, %v305
    %v308 = vunpack.c.l.s4 1983009808
    %v309 = vunpack.c.0.s8 %v308
    %v310 = vlaneseq
    %v311 = vshrl.u32 %v310, 7
    %v312 = vsub.s32 %v309, %v311
    %v313 = vrot.slane %v299, %v312
    %v314 = vcombine.high %v306, %v306
    %v315 = vcombine.high %v313, %v313
    %v316 = vcombine.high %v260, %v260
    %v318 = vunpack.c.l.s4 1983009808
    %v319 = vunpack.c.0.s8 %v318
    %v320 = vlaneseq
    %v321 = vshrl.u32 %v320, 7
    %v322 = vsub.s32 %v319, %v321
    %v323 = vrot.slane %v260, %v322
    %v325 = vunpack.c.l.s4 1983009808
    %v326 = vunpack.c.0.s8 %v325
    %v327 = vlaneseq
    %v328 = vshrl.u32 %v327, 7
    %v329 = vsub.s32 %v326, %v328
    %v330 = vrot.slane %v316, %v329
    %v331 = vcombine.high %v323, %v323
    %v332 = vcombine.high %v330, %v330
    %vm349 = vcmask 254976
    %v350 = vsel %vm349, %v272, -inf
    %v351 = vrot.slane %v350, 4
    %v352 = vmax.f32 %v350, %v351
    %v353 = vrot.slane %v352, 2
    %v354 = vmax.f32 %v352, %v353
    %v355 = vrot.slane %v354, 1
    %v356 = vmax.f32 %v354, %v355
    %v357 = vsel %vm349, %v280, -inf
    %v358 = vrot.slane %v357, 4
    %v359 = vmax.f32 %v357, %v358
    %v360 = vrot.slane %v359, 2
    %v361 = vmax.f32 %v359, %v360
    %v362 = vrot.slane %v361, 1
    %v363 = vmax.f32 %v361, %v362
    %v364 = vsel %vm349, %v279, -inf
    %v365 = vrot.slane %v364, 4
    %v366 = vmax.f32 %v364, %v365
    %v367 = vrot.slane %v366, 2
    %v368 = vmax.f32 %v366, %v367
    %v369 = vrot.slane %v368, 1
    %v370 = vmax.f32 %v368, %v369
    %v371 = vsel %vm349, %v281, -inf
    %v372 = vrot.slane %v371, 4
    %v373 = vmax.f32 %v371, %v372
    %v374 = vrot.slane %v373, 2
    %v375 = vmax.f32 %v373, %v374
    %v376 = vrot.slane %v375, 1
    %v377 = vmax.f32 %v375, %v376
    %v378 = vsel %vm349, %v289, -inf
    %v379 = vrot.slane %v378, 4
    %v380 = vmax.f32 %v378, %v379
    %v381 = vrot.slane %v380, 2
    %v382 = vmax.f32 %v380, %v381
    %v383 = vrot.slane %v382, 1
    %v384 = vmax.f32 %v382, %v383
    %v385 = vsel %vm349, %v297, -inf
    %v386 = vrot.slane %v385, 4
    %v387 = vmax.f32 %v385, %v386
    %v388 = vrot.slane %v387, 2
    %v389 = vmax.f32 %v387, %v388
    %v390 = vrot.slane %v389, 1
    %v391 = vmax.f32 %v389, %v390
    %v392 = vsel %vm349, %v296, -inf
    %v393 = vrot.slane %v392, 4
    %v394 = vmax.f32 %v392, %v393
    %v395 = vrot.slane %v394, 2
    %v396 = vmax.f32 %v394, %v395
    %v397 = vrot.slane %v396, 1
    %v398 = vmax.f32 %v396, %v397
    %v399 = vsel %vm349, %v298, -inf
    %v400 = vrot.slane %v399, 4
    %v401 = vmax.f32 %v399, %v400
    %v402 = vrot.slane %v401, 2
    %v403 = vmax.f32 %v401, %v402
    %v404 = vrot.slane %v403, 1
    %v405 = vmax.f32 %v403, %v404
    %v406 = vsel %vm349, %v306, -inf
    %v407 = vrot.slane %v406, 4
    %v408 = vmax.f32 %v406, %v407
    %v409 = vrot.slane %v408, 2
    %v410 = vmax.f32 %v408, %v409
    %v411 = vrot.slane %v410, 1
    %v412 = vmax.f32 %v410, %v411
    %v413 = vsel %vm349, %v314, -inf
    %v414 = vrot.slane %v413, 4
    %v415 = vmax.f32 %v413, %v414
    %v416 = vrot.slane %v415, 2
    %v417 = vmax.f32 %v415, %v416
    %v418 = vrot.slane %v417, 1
    %v419 = vmax.f32 %v417, %v418
    %v420 = vsel %vm349, %v313, -inf
    %v421 = vrot.slane %v420, 4
    %v422 = vmax.f32 %v420, %v421
    %v423 = vrot.slane %v422, 2
    %v424 = vmax.f32 %v422, %v423
    %v425 = vrot.slane %v424, 1
    %v426 = vmax.f32 %v424, %v425
    %v427 = vsel %vm349, %v315, -inf
    %v428 = vrot.slane %v427, 4
    %v429 = vmax.f32 %v427, %v428
    %v430 = vrot.slane %v429, 2
    %v431 = vmax.f32 %v429, %v430
    %v432 = vrot.slane %v431, 1
    %v433 = vmax.f32 %v431, %v432
    %v434 = vsel %vm349, %v323, -inf
    %v435 = vrot.slane %v434, 4
    %v436 = vmax.f32 %v434, %v435
    %v437 = vrot.slane %v436, 2
    %v438 = vmax.f32 %v436, %v437
    %v439 = vrot.slane %v438, 1
    %v440 = vmax.f32 %v438, %v439
    %v441 = vsel %vm349, %v331, -inf
    %v442 = vrot.slane %v441, 4
    %v443 = vmax.f32 %v441, %v442
    %v444 = vrot.slane %v443, 2
    %v445 = vmax.f32 %v443, %v444
    %v446 = vrot.slane %v445, 1
    %v447 = vmax.f32 %v445, %v446
    %v448 = vsel %vm349, %v330, -inf
    %v449 = vrot.slane %v448, 4
    %v450 = vmax.f32 %v448, %v449
    %v451 = vrot.slane %v450, 2
    %v452 = vmax.f32 %v450, %v451
    %v453 = vrot.slane %v452, 1
    %v454 = vmax.f32 %v452, %v453
    %v455 = vsel %vm349, %v332, -inf
    %v456 = vrot.slane %v455, 4
    %v457 = vmax.f32 %v455, %v456
    %v458 = vrot.slane %v457, 2
    %v459 = vmax.f32 %v457, %v458
    %v460 = vrot.slane %v459, 1
    %v461 = vmax.f32 %v459, %v460
    %v462 = vld [vmem:[%s2] sm:$0xff]
    %v463 = vld [vmem:[%s2 + $0x8] sm:$0xff]
    %v464 = vld [vmem:[%s2 + $0x10] sm:$0xff]
    %v465 = vld [vmem:[%s2 + $0x18] sm:$0xff]
    %v466 = vld [vmem:[%s2 + $0x20] sm:$0xff]
    %v467 = vld [vmem:[%s2 + $0x28] sm:$0xff]
    %v468 = vld [vmem:[%s2 + $0x30] sm:$0xff]
    %v469 = vld [vmem:[%s2 + $0x38] sm:$0xff]
    %v470 = vld [vmem:[%s2 + $0x40] sm:$0xff]
    %v471 = vld [vmem:[%s2 + $0x48] sm:$0xff]
    %v472 = vld [vmem:[%s2 + $0x50] sm:$0xff]
    %v473 = vld [vmem:[%s2 + $0x58] sm:$0xff]
    %vm486 = vcmask 1041409
    %v487 = vsel %vm486, %v363, %v356
    %vm488 = vcmask 1042434
    %v489 = vsel %vm488, %v370, %v487
    %vm490 = vcmask 1043459
    %v491 = vsel %vm490, %v377, %v489
    %vm492 = vcmask 1044484
    %v493 = vsel %vm492, %v384, %v491
    %vm494 = vcmask 1045509
    %v495 = vsel %vm494, %v391, %v493
    %v496 = vsel %vm486, %v419, %v412
    %v497 = vsel %vm488, %v426, %v496
    %v498 = vsel %vm490, %v433, %v497
    %v499 = vsel %vm492, %v440, %v498
    %v500 = vsel %vm494, %v447, %v499
    %v505 = vsel %vm486, %v370, %v363
    %v506 = vsel %vm488, %v377, %v505
    %v507 = vsel %vm490, %v384, %v506
    %v508 = vsel %vm492, %v391, %v507
    %v509 = vsel %vm494, %v398, %v508
    %v510 = vsel %vm486, %v426, %v419
    %v511 = vsel %vm488, %v433, %v510
    %v512 = vsel %vm490, %v440, %v511
    %v513 = vsel %vm492, %v447, %v512
    %v514 = vsel %vm494, %v454, %v513
    %515 = vrot.lane.b32.xlu0 %v509, 32
    %v516 = vpop.permute.xlu0 %515
    %517 = vrot.lane.b32.xlu0 %v514, 32
    %v518 = vpop.permute.xlu0 %517
    %v523 = vsel %vm486, %v377, %v370
    %v524 = vsel %vm488, %v384, %v523
    %v525 = vsel %vm490, %v391, %v524
    %v526 = vsel %vm492, %v398, %v525
    %v527 = vsel %vm494, %v405, %v526
    %v528 = vsel %vm486, %v433, %v426
    %v529 = vsel %vm488, %v440, %v528
    %v530 = vsel %vm490, %v447, %v529
    %v531 = vsel %vm492, %v454, %v530
    %v532 = vsel %vm494, %v461, %v531
    %533 = vrot.lane.b32.xlu0 %v527, 64
    %v534 = vpop.permute.xlu0 %533
    %535 = vrot.lane.b32.xlu0 %v532, 64
    %v536 = vpop.permute.xlu0 %535
    %v539 = vsel %vm198, %v495, %v516
    %v540 = vsel %vm198, %v500, %v518
    %vm541 = vcmask 523264
    %v542 = vsel %vm541, %v539, %v534
    %v543 = vsel %vm541, %v540, %v536
    %v546 = vcombine.high %v542, %v542
    %v548 = vunpack.c.l.s4 1983009808
    %v549 = vunpack.c.0.s8 %v548
    %v550 = vlaneseq
    %v551 = vshrl.u32 %v550, 7
    %v552 = vsub.s32 %v549, %v551
    %v553 = vrot.slane %v542, %v552
    %v555 = vunpack.c.l.s4 1983009808
    %v556 = vunpack.c.0.s8 %v555
    %v557 = vlaneseq
    %v558 = vshrl.u32 %v557, 7
    %v559 = vsub.s32 %v556, %v558
    %v560 = vrot.slane %v546, %v559
    %v561 = vcombine.high %v553, %v553
    %v562 = vcombine.high %v543, %v543
    %v564 = vunpack.c.l.s4 1983009808
    %v565 = vunpack.c.0.s8 %v564
    %v566 = vlaneseq
    %v567 = vshrl.u32 %v566, 7
    %v568 = vsub.s32 %v565, %v567
    %v569 = vrot.slane %v543, %v568
    %v571 = vunpack.c.l.s4 1983009808
    %v572 = vunpack.c.0.s8 %v571
    %v573 = vlaneseq
    %v574 = vshrl.u32 %v573, 7
    %v575 = vsub.s32 %v572, %v574
    %v576 = vrot.slane %v562, %v575
    %v577 = vcombine.high %v569, %v569
    %v578 = vcombine.low %v553, %v561
    %v579 = vcombine.low %v560, %v569
    %v581 = vunpack.c.l.s4 1983009808
    %v582 = vunpack.c.0.s8 %v581
    %v583 = vlaneseq
    %v584 = vshrl.u32 %v583, 7
    %v585 = vsub.s32 %v582, %v584
    %v586 = vrot.slane %v578, %v585
    %v588 = vunpack.c.l.s4 1983009808
    %v589 = vunpack.c.0.s8 %v588
    %v590 = vlaneseq
    %v591 = vshrl.u32 %v590, 7
    %v592 = vsub.s32 %v589, %v591
    %v593 = vrot.slane %v579, %v592
    %v594 = vcombine.low %v586, %v593
    %v595 = vcombine.low %v577, %v576
    %v597 = vunpack.c.l.s4 1983009808
    %v598 = vunpack.c.0.s8 %v597
    %v599 = vlaneseq
    %v600 = vshrl.u32 %v599, 7
    %v601 = vsub.s32 %v598, %v600
    %v602 = vrot.slane %v595, %v601
    %vm603 = vcmask 785408
    %v604 = vsel %vm603, %v594, 0
    %v606 = vsel %vm603, %v602, 0
    %608 = vmatprep.subr.mxu0 0.0
    %609 = vmatpush1.msra.mxu0 %v462
    %610 = vmatprep.subr.mxu0 0.0
    %611 = vmatpush1.msra.mxu0 %v463
    %612 = vmatprep.subr.mxu0 0.0
    %613 = vmatpush1.msra.mxu0 %v464
    %614 = vmatprep.subr.mxu0 0.0
    %615 = vmatpush1.msra.mxu0 %v465
    %616 = vmatprep.subr.mxu0 0.0
    %617 = vmatpush1.msra.mxu0 %v466
    %618 = vmatprep.subr.mxu0 0.0
    %619 = vmatpush1.msra.mxu0 %v467
    %620 = vmatprep.subr.mxu0 0.0
    %621 = vmatpush1.msra.mxu0 %v468
    %622 = vmatprep.subr.mxu0 0.0
    %623 = vmatpush1.msra.mxu0 %v469
    %624 = vmatprep.subr.mxu0 0.0
    %625 = vmatpush1.msra.mxu0 %v470
    %626 = vmatprep.subr.mxu0 0.0
    %627 = vmatpush1.msra.mxu0 %v471
    %628 = vmatprep.subr.mxu0 0.0
    %629 = vmatpush1.msra.mxu0 %v472
    %630 = vmatprep.subr.mxu0 0.0
    %631 = vmatpush1.msra.mxu0 %v473
    %632 = vmatprep.subr.mxu0 0.0
    %633 = vmatpush1.msra.mxu0 0.0
    %634 = vmatprep.subr.mxu0 0.0
    %635 = vmatpush1.msra.mxu0 0.0
    %636 = vmatprep.subr.mxu0 0.0
    %637 = vmatpush1.msra.mxu0 0.0
    %638 = vmatprep.subr.mxu0 0.0
    %639 = vmatpush1.msra.mxu0 0.0
    %640 = vmatprep.subr.mxu0 0.0
    %641 = vmatpush1.msra.mxu0 0.0
    %642 = vmatprep.subr.mxu0 0.0
    %643 = vmatpush1.msra.mxu0 0.0
    %644 = vmatprep.subr.mxu0 0.0
    %645 = vmatpush1.msra.mxu0 0.0
    %646 = vmatprep.subr.mxu0 0.0
    %647 = vmatpush1.msra.mxu0 0.0
    %648 = vmatprep.subr.mxu0 0.0
    %649 = vmatpush1.msra.mxu0 0.0
    %650 = vmatprep.subr.mxu0 0.0
    %651 = vmatpush1.msra.mxu0 0.0
    %652 = vmatprep.subr.mxu0 0.0
    %653 = vmatpush1.msra.mxu0 0.0
    %654 = vmatprep.subr.mxu0 0.0
    %655 = vmatpush1.msra.mxu0 0.0
    %656 = vmatprep.subr.mxu0 0.0
    %657 = vmatpush1.msra.mxu0 0.0
    %658 = vmatprep.subr.mxu0 0.0
    %659 = vmatpush1.msra.mxu0 0.0
    %660 = vmatprep.subr.mxu0 0.0
    %661 = vmatpush1.msra.mxu0 0.0
    %662 = vmatprep.subr.mxu0 0.0
    %663 = vmatpush1.msra.mxu0 0.0
    %664 = vmatprep.subr.mxu0 0.0
    %665 = vmatpush1.msra.mxu0 0.0
    %666 = vmatprep.subr.mxu0 0.0
    %667 = vmatpush1.msra.mxu0 0.0
    %668 = vmatprep.subr.mxu0 0.0
    %669 = vmatpush1.msra.mxu0 0.0
    %670 = vmatprep.subr.mxu0 0.0
    %671 = vmatpush1.msra.mxu0 0.0
    %672 = vmatprep.mubr.f32.mxu0 0.0
    %673 = vmatmul.mubr.f32.gmra.mrb[0].mxu0 %v604
    %v674 = vpop.f32.mrb[0].mxu0
    %v675 = vadd.f32 0.0, %v674
    %v676 = vpop.f32.mrb[0].mxu0
    %677 = vmatprep.mubr.f32.mxu0 0.0
    %678 = vmatmul.mubr.f32.gmra.mrb[0].mxu0 %v606
    %v679 = vpop.f32.mrb[0].mxu0
    %v680 = vadd.f32 0.0, %v679
    %v681 = vpop.f32.mrb[0].mxu0
    %682 = vdwg.mxu0
    %v685 = vcombine.high %v675, %v675
    %v687 = vunpack.c.l.s4 1983009808
    %v688 = vunpack.c.0.s8 %v687
    %v689 = vlaneseq
    %v690 = vshrl.u32 %v689, 7
    %v691 = vsub.s32 %v688, %v690
    %v692 = vrot.slane %v675, %v691
    %v694 = vunpack.c.l.s4 1983009808
    %v695 = vunpack.c.0.s8 %v694
    %v696 = vlaneseq
    %v697 = vshrl.u32 %v696, 7
    %v698 = vsub.s32 %v695, %v697
    %v699 = vrot.slane %v685, %v698
    %v700 = vcombine.high %v692, %v692
    %v701 = vcombine.high %v699, %v699
    %v703 = vunpack.c.l.s4 1983009808
    %v704 = vunpack.c.0.s8 %v703
    %v705 = vlaneseq
    %v706 = vshrl.u32 %v705, 7
    %v707 = vsub.s32 %v704, %v706
    %v708 = vrot.slane %v680, %v707
    %v709 = vcombine.high %v708, %v708
    %v716 = vcombine.low %v692, %v700
    %v718 = vunpack.c.l.s4 1983009808
    %v719 = vunpack.c.0.s8 %v718
    %v720 = vlaneseq
    %v721 = vshrl.u32 %v720, 7
    %v722 = vsub.s32 %v719, %v721
    %v723 = vrot.slane %v716, %v722
    %v725 = vunpack.c.l.s4 1983009808
    %v726 = vunpack.c.0.s8 %v725
    %v727 = vlaneseq
    %v728 = vshrl.u32 %v727, 7
    %v729 = vsub.s32 %v726, %v728
    %v730 = vrot.slane %v699, %v729
    %v731 = vcombine.low %v723, %v730
    %v732 = vcombine.low %v701, %v708
    %v734 = vunpack.c.l.s4 1983009808
    %v735 = vunpack.c.0.s8 %v734
    %v736 = vlaneseq
    %v737 = vshrl.u32 %v736, 7
    %v738 = vsub.s32 %v735, %v737
    %v739 = vrot.slane %v732, %v738
    %v741 = vunpack.c.l.s4 1983009808
    %v742 = vunpack.c.0.s8 %v741
    %v743 = vlaneseq
    %v744 = vshrl.u32 %v743, 7
    %v745 = vsub.s32 %v742, %v744
    %v746 = vrot.slane %v709, %v745
    %v747 = vcombine.low %v739, %v746
    %vm750 = vcmask 521216
    %v751 = vsel %vm750, %v731, 0.0
    %v752 = vsel %vm750, %v747, 0.0
    %v753 = vadd.f32 %v751, %v752
    %v754 = vrot.slane %v753, 4
    %v755 = vadd.f32 %v753, %v754
    %v756 = vrot.slane %v755, 2
    %v757 = vadd.f32 %v755, %v756
    %v758 = vrot.slane %v757, 1
    %v759 = vadd.f32 %v757, %v758
    %v760 = vmul.f32 %v692, %v692
    %v761 = vmul.f32 %v700, %v700
    %v762 = vmul.f32 %v699, %v699
    %v763 = vmul.f32 %v701, %v701
    %v764 = vmul.f32 %v708, %v708
    %v765 = vmul.f32 %v709, %v709
    %v772 = vcombine.low %v760, %v761
    %v774 = vunpack.c.l.s4 1983009808
    %v775 = vunpack.c.0.s8 %v774
    %v776 = vlaneseq
    %v777 = vshrl.u32 %v776, 7
    %v778 = vsub.s32 %v775, %v777
    %v779 = vrot.slane %v772, %v778
    %v781 = vunpack.c.l.s4 1983009808
    %v782 = vunpack.c.0.s8 %v781
    %v783 = vlaneseq
    %v784 = vshrl.u32 %v783, 7
    %v785 = vsub.s32 %v782, %v784
    %v786 = vrot.slane %v762, %v785
    %v787 = vcombine.low %v779, %v786
    %v788 = vcombine.low %v763, %v764
    %v790 = vunpack.c.l.s4 1983009808
    %v791 = vunpack.c.0.s8 %v790
    %v792 = vlaneseq
    %v793 = vshrl.u32 %v792, 7
    %v794 = vsub.s32 %v791, %v793
    %v795 = vrot.slane %v788, %v794
    %v797 = vunpack.c.l.s4 1983009808
    %v798 = vunpack.c.0.s8 %v797
    %v799 = vlaneseq
    %v800 = vshrl.u32 %v799, 7
    %v801 = vsub.s32 %v798, %v800
    %v802 = vrot.slane %v765, %v801
    %v803 = vcombine.low %v795, %v802
    %v806 = vsel %vm750, %v787, 0.0
    %v807 = vsel %vm750, %v803, 0.0
    %v808 = vadd.f32 %v806, %v807
    %v809 = vrot.slane %v808, 4
    %v810 = vadd.f32 %v808, %v809
    %v811 = vrot.slane %v810, 2
    %v812 = vadd.f32 %v810, %v811
    %v813 = vrot.slane %v812, 1
    %v814 = vadd.f32 %v812, %v813
    %v815 = vmul.f32 %v759, 0.083333336
    %v816 = vmul.f32 %v814, 0.083333336
    %v817 = vmul.f32 %v815, %v815
    %v818 = vsub.f32 %v816, %v817
    %v819 = vadd.f32 %v818, 1e-05
    %v820 = vrsqrt.pop %v819
    %v821 = vmul.f32 %v27, %v820
    %v822 = vmul.f32 %v815, %v821
    %v824 = vrot.slane %v822, 7
    %v826 = vsub.f32 %v27, %v824
    %v827 = vlaneseq
    %v828 = vshrl.u32 %v827, 7
    %v829 = vsub.s32 2, %v828
    %v830 = vrot.slane %v821, %v829
    %v832 = vcombine.high %v830, %v830
    %v834 = vunpack.c.l.s4 1983009808
    %v835 = vunpack.c.0.s8 %v834
    %v836 = vlaneseq
    %v837 = vshrl.u32 %v836, 7
    %v838 = vsub.s32 %v835, %v837
    %v839 = vrot.slane %v830, %v838
    %v841 = vunpack.c.l.s4 1983009808
    %v842 = vunpack.c.0.s8 %v841
    %v843 = vlaneseq
    %v844 = vshrl.u32 %v843, 7
    %v845 = vsub.s32 %v842, %v844
    %v846 = vrot.slane %v832, %v845
    %v847 = vcombine.high %v839, %v839
    %v851 = vmul.f32 %v692, %v839
    %v852 = vmul.f32 %v700, %v847
    %v853 = vmul.f32 %v699, %v846
    %v854 = vmul.f32 %v701, %v839
    %v855 = vmul.f32 %v708, %v847
    %v856 = vmul.f32 %v709, %v846
    %v857 = vlaneseq
    %v858 = vshrl.u32 %v857, 7
    %v859 = vsub.s32 3, %v858
    %v860 = vrot.slane %v826, %v859
    %v862 = vcombine.high %v860, %v860
    %v864 = vunpack.c.l.s4 1983009808
    %v865 = vunpack.c.0.s8 %v864
    %v866 = vlaneseq
    %v867 = vshrl.u32 %v866, 7
    %v868 = vsub.s32 %v865, %v867
    %v869 = vrot.slane %v860, %v868
    %v871 = vunpack.c.l.s4 1983009808
    %v872 = vunpack.c.0.s8 %v871
    %v873 = vlaneseq
    %v874 = vshrl.u32 %v873, 7
    %v875 = vsub.s32 %v872, %v874
    %v876 = vrot.slane %v862, %v875
    %v877 = vcombine.high %v869, %v869
    %v881 = vadd.f32 %v851, %v869
    %v882 = vadd.f32 %v852, %v877
    %v883 = vadd.f32 %v853, %v876
    %v884 = vadd.f32 %v854, %v869
    %v885 = vadd.f32 %v855, %v877
    %v886 = vadd.f32 %v856, %v876
    %v887 = vmax.f32 %v881, 0.0
    %v888 = vmax.f32 %v882, 0.0
    %v889 = vmax.f32 %v883, 0.0
    %v890 = vmax.f32 %v884, 0.0
    %v891 = vmax.f32 %v885, 0.0
    %v892 = vmax.f32 %v886, 0.0
    %vm893 = vcmask 517120
    %v894 = vsel %vm893, %v887, -inf
    %v895 = vrot.slane %v894, 4
    %v896 = vmax.f32 %v894, %v895
    %v897 = vrot.slane %v896, 2
    %v898 = vmax.f32 %v896, %v897
    %v899 = vrot.slane %v898, 1
    %v900 = vmax.f32 %v898, %v899
    %v901 = vsel %vm893, %v888, -inf
    %v902 = vrot.slane %v901, 4
    %v903 = vmax.f32 %v901, %v902
    %v904 = vrot.slane %v903, 2
    %v905 = vmax.f32 %v903, %v904
    %v906 = vrot.slane %v905, 1
    %v907 = vmax.f32 %v905, %v906
    %v908 = vsel %vm893, %v889, -inf
    %v909 = vrot.slane %v908, 4
    %v910 = vmax.f32 %v908, %v909
    %v911 = vrot.slane %v910, 2
    %v912 = vmax.f32 %v910, %v911
    %v913 = vrot.slane %v912, 1
    %v914 = vmax.f32 %v912, %v913
    %v915 = vsel %vm893, %v890, -inf
    %v916 = vrot.slane %v915, 4
    %v917 = vmax.f32 %v915, %v916
    %v918 = vrot.slane %v917, 2
    %v919 = vmax.f32 %v917, %v918
    %v920 = vrot.slane %v919, 1
    %v921 = vmax.f32 %v919, %v920
    %v922 = vsel %vm893, %v891, -inf
    %v923 = vrot.slane %v922, 4
    %v924 = vmax.f32 %v922, %v923
    %v925 = vrot.slane %v924, 2
    %v926 = vmax.f32 %v924, %v925
    %v927 = vrot.slane %v926, 1
    %v928 = vmax.f32 %v926, %v927
    %v929 = vsel %vm893, %v892, -inf
    %v930 = vrot.slane %v929, 4
    %v931 = vmax.f32 %v929, %v930
    %v932 = vrot.slane %v931, 2
    %v933 = vmax.f32 %v931, %v932
    %v934 = vrot.slane %v933, 1
    %v935 = vmax.f32 %v933, %v934
    %v942 = vsel %vm486, %v907, %v900
    %v943 = vsel %vm488, %v914, %v942
    %v944 = vsel %vm486, %v928, %v921
    %v945 = vsel %vm488, %v935, %v944
    %v948 = vunpack.c.l.s4 1983009808
    %v949 = vunpack.c.0.s8 %v948
    %v950 = vlaneseq
    %v951 = vshrl.u32 %v950, 7
    %v952 = vsub.s32 %v949, %v951
    %v953 = vrot.slane %v943, %v952
    %v956 = vunpack.c.l.s4 1983009808
    %v957 = vunpack.c.0.s8 %v956
    %v958 = vlaneseq
    %v959 = vshrl.u32 %v958, 7
    %v960 = vsub.s32 %v957, %v959
    %v961 = vrot.slane %v945, %v960
    %v962 = vcombine.low %v953, %v961
    %v963 = vcombine.high %v953, %v961
    %v965 = vunpack.c.l.s4 1934713408
    %v966 = vunpack.c.0.s8 %v965
    %v967 = vlaneseq
    %v968 = vshrl.u32 %v967, 7
    %v969 = vsub.s32 %v966, %v968
    %v970 = vrot.slane %v962, %v969
    %v971 = vcombine.high %v970, 0.0
    %v973 = vunpack.c.l.s4 1934713408
    %v974 = vunpack.c.0.s8 %v973
    %v975 = vlaneseq
    %v976 = vshrl.u32 %v975, 7
    %v977 = vsub.s32 %v974, %v976
    %v978 = vrot.slane %v963, %v977
    %980 = vrot.lane.b32.xlu0 %v971, 64
    %v981 = vpop.permute.xlu0 %980
    %v983 = vsel %vm541, %v970, %v981
    %v984 = vld [vmem:[%s3] sm:$0xff]
    %v985 = vld [vmem:[%s3 + $0x8] sm:$0xff]
    %v986 = vld [vmem:[%s3 + $0x10] sm:$0xff]
    %v987 = vld [vmem:[%s3 + $0x18] sm:$0xff]
    %v988 = vld [vmem:[%s3 + $0x20] sm:$0xff]
    %v989 = vld [vmem:[%s3 + $0x28] sm:$0xff]
    %v990 = vld [vmem:[%s3 + $0x30] sm:$0xff]
    %v991 = vld [vmem:[%s3 + $0x38] sm:$0xff]
    %v992 = vld [vmem:[%s3 + $0x40] sm:$0xff]
    %v993 = vld [vmem:[%s3 + $0x48] sm:$0xff]
    %v994 = vld [vmem:[%s3 + $0x50] sm:$0xff]
    %v995 = vld [vmem:[%s3 + $0x58] sm:$0xff]
    %v996 = vld [vmem:[%s3 + $0x60] sm:$0xff]
    %v997 = vld [vmem:[%s3 + $0x68] sm:$0xff]
    %v998 = vld [vmem:[%s3 + $0x70] sm:$0xff]
    %v999 = vld [vmem:[%s3 + $0x78] sm:$0xff]
    %v1000 = vld [vmem:[%s3 + $0x80] sm:$0xff]
    %v1001 = vld [vmem:[%s3 + $0x88] sm:$0xff]
    %v1002 = vld [vmem:[%s3 + $0x90] sm:$0xff]
    %v1003 = vld [vmem:[%s3 + $0x98] sm:$0xff]
    %v1004 = vld [vmem:[%s3 + $0xa0] sm:$0xff]
    %v1005 = vld [vmem:[%s3 + $0xa8] sm:$0xff]
    %v1006 = vld [vmem:[%s3 + $0xb0] sm:$0xff]
    %v1007 = vld [vmem:[%s3 + $0xb8] sm:$0xff]
    %v1008 = vlaneseq
    %v1009 = vshrl.u32 %v1008, 7
    %v1010 = vsub.s32 4, %v1009
    %v1011 = vrot.slane %v27, %v1010
    %v1013 = vsel %vm541, %v978, 0
    %1015 = vmatprep.subr.mxu0 0.0
    %1016 = vmatpush1.msra.mxu0 %v984
    %1017 = vmatprep.subr.mxu0 0.0
    %1018 = vmatpush1.msra.mxu0 %v985
    %1019 = vmatprep.subr.mxu0 0.0
    %1020 = vmatpush1.msra.mxu0 %v986
    %1021 = vmatprep.subr.mxu0 0.0
    %1022 = vmatpush1.msra.mxu0 %v987
    %1023 = vmatprep.subr.mxu0 0.0
    %1024 = vmatpush1.msra.mxu0 %v988
    %1025 = vmatprep.subr.mxu0 0.0
    %1026 = vmatpush1.msra.mxu0 %v989
    %1027 = vmatprep.subr.mxu0 0.0
    %1028 = vmatpush1.msra.mxu0 %v990
    %1029 = vmatprep.subr.mxu0 0.0
    %1030 = vmatpush1.msra.mxu0 %v991
    %1031 = vmatprep.subr.mxu0 0.0
    %1032 = vmatpush1.msra.mxu0 %v992
    %1033 = vmatprep.subr.mxu0 0.0
    %1034 = vmatpush1.msra.mxu0 %v993
    %1035 = vmatprep.subr.mxu0 0.0
    %1036 = vmatpush1.msra.mxu0 %v994
    %1037 = vmatprep.subr.mxu0 0.0
    %1038 = vmatpush1.msra.mxu0 %v995
    %1039 = vmatprep.subr.mxu0 0.0
    %1040 = vmatpush1.msra.mxu0 %v996
    %1041 = vmatprep.subr.mxu0 0.0
    %1042 = vmatpush1.msra.mxu0 %v997
    %1043 = vmatprep.subr.mxu0 0.0
    %1044 = vmatpush1.msra.mxu0 %v998
    %1045 = vmatprep.subr.mxu0 0.0
    %1046 = vmatpush1.msra.mxu0 %v999
    %1047 = vmatprep.subr.mxu0 0.0
    %1048 = vmatpush1.msra.mxu0 %v1000
    %1049 = vmatprep.subr.mxu0 0.0
    %1050 = vmatpush1.msra.mxu0 %v1001
    %1051 = vmatprep.subr.mxu0 0.0
    %1052 = vmatpush1.msra.mxu0 %v1002
    %1053 = vmatprep.subr.mxu0 0.0
    %1054 = vmatpush1.msra.mxu0 %v1003
    %1055 = vmatprep.subr.mxu0 0.0
    %1056 = vmatpush1.msra.mxu0 %v1004
    %1057 = vmatprep.subr.mxu0 0.0
    %1058 = vmatpush1.msra.mxu0 %v1005
    %1059 = vmatprep.subr.mxu0 0.0
    %1060 = vmatpush1.msra.mxu0 %v1006
    %1061 = vmatprep.subr.mxu0 0.0
    %1062 = vmatpush1.msra.mxu0 %v1007
    %1063 = vmatprep.subr.mxu0 0.0
    %1064 = vmatpush1.msra.mxu0 0.0
    %1065 = vmatprep.subr.mxu0 0.0
    %1066 = vmatpush1.msra.mxu0 0.0
    %1067 = vmatprep.subr.mxu0 0.0
    %1068 = vmatpush1.msra.mxu0 0.0
    %1069 = vmatprep.subr.mxu0 0.0
    %1070 = vmatpush1.msra.mxu0 0.0
    %1071 = vmatprep.subr.mxu0 0.0
    %1072 = vmatpush1.msra.mxu0 0.0
    %1073 = vmatprep.subr.mxu0 0.0
    %1074 = vmatpush1.msra.mxu0 0.0
    %1075 = vmatprep.subr.mxu0 0.0
    %1076 = vmatpush1.msra.mxu0 0.0
    %1077 = vmatprep.subr.mxu0 0.0
    %1078 = vmatpush1.msra.mxu0 0.0
    %1079 = vmatprep.mubr.f32.mxu0 %v1013
    %1080 = vmatmul.mubr.f32.gmra.mrb[0].mxu0 %v983
    %v1081 = vpop.f32.mrb[0].mxu0
    %v1082 = vadd.f32 %v1011, %v1081
    %v1083 = vpop.f32.mrb[0].mxu0
    %1084 = vdwg.mxu0
    %v1085 = vmax.f32 %v1082, 0.0
    %vm1086 = vcmask 123904
    %1087 = vst.msk [vmem:[#allocation2] sm:$0x3] %vm1086, %v1085
    // Predicated region
    $region22: #{tpu_custom_call.1} parent=1 // pred_check
      _
    $region23: #{tpu_custom_call.1} parent=1 // pred_check_branch
      %1089 = sbr.rel (0) target = $region25
    $region24: #{tpu_custom_call.1} parent=1 // pred_region
      %s1091 = ssub.s32 32, 32
      %1092 = vsyncadd [#allocation3], %s1091
      %s1094 = sshll.u32 [#allocation2], 4
      %s1095 = int_to_ptr.vmem [resolvable:$true] %s1094
      %1097 = dma.vmem_to_hbm [thread:$0]  %s1095, 32, %s5, [#allocation3]
    $region25: #{tpu_custom_call.1} parent=1 // pred_fallthru
      _
    // Predicated region
    $region26: #{tpu_custom_call.1} parent=1 // pred_check
      _
    $region27: #{tpu_custom_call.1} parent=1 // pred_check_branch
      %1099 = sbr.rel (0) target = $region29
    $region28: #{tpu_custom_call.1} parent=1 // pred_region
      %1100 = dma.done [#allocation3], 32
    $region29: #{tpu_custom_call.1} parent=1 // pred_fallthru
      _
    %1101 = vsyncpa [#allocation3], 1

</llo_original>
